<compile_context>
chip_gen: v7x
topology: tpu7x:2x2x1
jax: 0.10.0
libtpu: 0.0.40
codegen_flags: <defaults>
</compile_context>

<pallas_src>
import jax
import jax.numpy as jnp
import numpy as np
from jax.experimental import pallas as pl
from jax.experimental.pallas import tpu as pltpu


def _round_up(x, m):
    return ((x + m - 1) // m) * m


# --------------------------------------------------------------------------
# Kernels: fused (folded) 1x1-conv head in transposed (C, H*W) layout,
# optionally with the inference sigmoid + box decode fused into the epilogue.
#   raw = W'(Cout,Cin) @ x(Cin,thw) + b'(Cout,1)
#   dec = where(is_wh, (sig*scale)^2, sig*scale + off)
# scale: per-row column (2*stride for xy rows, 2*sqrt(anchor) for wh rows, 1
# otherwise).  off: per-lane (grid-0.5)*stride rows, precomputed outside the
# kernel so the epilogue has no integer div/mod.
# --------------------------------------------------------------------------
def make_head_kernel(no, decode, emit_raw):
    def _raw(x_ref, w_ref, b_ref):
        acc = jnp.dot(w_ref[...], x_ref[0], preferred_element_type=jnp.float32)
        return acc + b_ref[...]                               # (Cout, thw) f32

    if not decode:
        def kernel(x_ref, w_ref, b_ref, raw_ref):
            raw_ref[0] = _raw(x_ref, w_ref, b_ref).astype(raw_ref.dtype)
        return kernel

    def _decode(raw, off_ref, scale_ref):
        cout = raw.shape[0]
        c_row = jax.lax.broadcasted_iota(jnp.int32, (cout, 1), 0) % no
        is_x = c_row == 0
        is_y = c_row == 1
        is_wh = jnp.logical_and(c_row >= 2, c_row < 4)
        off = off_ref[...]                                    # (2, thw) f32
        sig = jax.nn.sigmoid(raw)
        t = sig * scale_ref[...]                              # per-row scale
        o = jnp.where(is_x, off[0:1, :], jnp.where(is_y, off[1:2, :], 0.0))
        return jnp.where(is_wh, t * t, t + o)

    if emit_raw:
        def kernel(x_ref, off_ref, w_ref, b_ref, scale_ref, raw_ref, dec_ref):
            raw = _raw(x_ref, w_ref, b_ref)
            raw_ref[0] = raw.astype(raw_ref.dtype)
            dec_ref[0] = _decode(raw, off_ref, scale_ref)
        return kernel

    def kernel(x_ref, off_ref, w_ref, b_ref, scale_ref, dec_ref):
        dec_ref[0] = _decode(_raw(x_ref, w_ref, b_ref), off_ref, scale_ref)
    return kernel


def _default_hw_cap():
    # Bigger lane tiles on the 128 MiB-VMEM generations (v5e/v6e); stay at 2048
    # on v7x (64 MiB VMEM).  Falls back safely if the query is unavailable.
    try:
        if pltpu.get_tpu_info().vmem_capacity_bytes >= (96 << 20):
            return 4096
        return 2048
    except Exception:
        return 2048


def conv_head(x_nchw, wT, b_col, *, decode=False, scale_col=None, offsets=None,
              no=None, emit_raw=True, hw_cap=None,
              compute_dtype=jnp.float32, out_dtype=jnp.float32):
    """x_nchw: (B, Cin, H, W); wT: (Cout, Cin); b_col: (Cout, 1).

    Returns raw (B, Cout, H*W); if decode=True, also/only the decoded tensor
    (depending on emit_raw).  compute_dtype=bf16 halves HBM read traffic when
    the feature map is already bf16 (accumulation and decode stay f32)."""
    B, cin, H, W = x_nchw.shape
    cout = wT.shape[0]
    hw = H * W
    if hw_cap is None:
        hw_cap = _default_hw_cap()

    # ---- lane tile (last dim of every block) ------------------------------
    if hw <= 128:
        thw = hw                               # block == full dim
    else:
        thw = min(hw_cap, _round_up(hw, 128))  # multiple of 128
        # v7x megacore: keep >=2 grid steps when B == 1 so both TCs get work.
        if B == 1 and thw >= hw and hw > 256:
            thw = _round_up(pl.cdiv(hw, 2), 128)
    n_sp = pl.cdiv(hw, thw)                    # last block may be partial:
                                               # OOB reads = unused matmul
                                               # columns, OOB writes dropped.

    xf = x_nchw.reshape(B, cin, hw).astype(compute_dtype)  # no-op if already cast
    wT = wT.astype(compute_dtype)
    b_col = b_col.astype(jnp.float32)

    grid = (B, n_sp)
    x_spec = pl.BlockSpec((1, cin, thw), lambda b, j: (b, 0, j))
    w_spec = pl.BlockSpec((cout, cin), lambda b, j: (0, 0))
    col_spec = pl.BlockSpec((cout, 1), lambda b, j: (0, 0))
    o_spec = pl.BlockSpec((1, cout, thw), lambda b, j: (b, 0, j))

    # VMEM limit from the actual double-buffered block footprint (+ headroom),
    # capped at 56 MiB so it is valid on v7x's 64 MiB VMEM as well.
    isz = jnp.dtype(compute_dtype).itemsize
    n_outs = (2 if emit_raw else 1) if decode else 1
    fp = (2 * cin * thw * isz + 2 * n_outs * cout * thw * 4
          + cout * cin * isz + 8 * cout + (2 * 2 * thw * 4 if decode else 0))
    vmem_limit = int(min(max(2 * fp + (8 << 20), 32 << 20), 56 << 20))
    cparams = pltpu.CompilerParams(
        dimension_semantics=("parallel", "parallel"),
        vmem_limit_bytes=vmem_limit)

    kern = make_head_kernel(no, decode, emit_raw)

    if not decode:
        return pl.pallas_call(
            kern,
            out_shape=jax.ShapeDtypeStruct((B, cout, hw), out_dtype),
            grid=grid,
            in_specs=[x_spec, w_spec, col_spec],
            out_specs=o_spec,
            compiler_params=cparams,
        )(xf, wT, b_col)

    off_spec = pl.BlockSpec((2, thw), lambda b, j: (0, j))
    ins = (xf, offsets.astype(jnp.float32), wT, b_col,
           scale_col.astype(jnp.float32))
    in_specs = [x_spec, off_spec, w_spec, col_spec, col_spec]

    if emit_raw:
        raw, dec = pl.pallas_call(
            kern,
            out_shape=(jax.ShapeDtypeStruct((B, cout, hw), out_dtype),
                       jax.ShapeDtypeStruct((B, cout, hw), jnp.float32)),
            grid=grid, in_specs=in_specs, out_specs=(o_spec, o_spec),
            compiler_params=cparams,
        )(*ins)
        return raw, dec

    dec = pl.pallas_call(
        kern,
        out_shape=jax.ShapeDtypeStruct((B, cout, hw), jnp.float32),
        grid=grid, in_specs=in_specs, out_specs=o_spec,
        compiler_params=cparams,
    )(*ins)
    return dec


# --------------------------------------------------------------------------
# Parameter folding / decode-constant prep (tiny one-time JAX ops).
# --------------------------------------------------------------------------
def fold_lead_params(ia, w, b, im):
    """((x + ia) @ w + b) * im  ==  x @ (w * im) + (ia @ w + b) * im."""
    w_f = w * im                       # (Cin, Cout)
    b_f = (ia @ w + b) * im            # (1, Cout)
    return jnp.transpose(w_f), b_f.reshape(-1, 1)


def make_scale_rows(anchors_i, na, no, stride):
    """Per-row scale column: 2*stride (xy rows), 2*sqrt(anchor) (wh rows), 1."""
    sc = jnp.ones((na, no), jnp.float32)
    sc = sc.at[:, 0].set(2.0 * stride)
    sc = sc.at[:, 1].set(2.0 * stride)
    sc = sc.at[:, 2].set(2.0 * jnp.sqrt(anchors_i[:, 0]))
    sc = sc.at[:, 3].set(2.0 * jnp.sqrt(anchors_i[:, 1]))
    return sc.reshape(na * no, 1)


def make_xy_offsets(H, W, stride):
    """(2, H*W): row0 = (gx-0.5)*stride, row1 = (gy-0.5)*stride."""
    s = jnp.arange(H * W, dtype=jnp.int32)
    gx = (s % W).astype(jnp.float32)
    gy = (s // W).astype(jnp.float32)
    return jnp.stack([(gx - 0.5) * stride, (gy - 0.5) * stride], axis=0)


# --------------------------------------------------------------------------
# IAuxDetect.forward
# --------------------------------------------------------------------------
def iaux_detect_forward(xs, params, anchors, strides, nc, nl, na,
                        training=False, return_lead=True,
                        compute_dtype=jnp.float32, hw_cap=None):
    """xs: list of 2*nl NCHW feature maps (lead heads first, then aux heads).

    training=True  -> list of 2*nl reshaped head outputs (lead + aux).
    training=False -> (cat(z,1), lead) like the module, or just cat(z,1) when
                      return_lead=False (skips the raw-output HBM write)."""
    no = nc + 5
    lead, aux, z = [], [], []
    for i in range(nl):
        x = xs[i]
        B, C, H, W = x.shape
        hw = H * W
        wT, b_col = fold_lead_params(params["ia"][i], params["w"][i],
                                     params["b"][i], params["im"][i])

        if training:
            raw = conv_head(x, wT, b_col, decode=False,
                            compute_dtype=compute_dtype, hw_cap=hw_cap)
            lead.append(raw.reshape(B, na, no, H, W).transpose(0, 1, 3, 4, 2))
            # Aux head only contributes to the training return.
            xa = xs[i + nl]
            Ba, Ca, Ha, Wa = xa.shape
            raw2 = conv_head(xa, jnp.transpose(params["w2"][i]),
                             params["b2"][i].reshape(-1, 1), decode=False,
                             compute_dtype=compute_dtype, hw_cap=hw_cap)
            aux.append(raw2.reshape(Ba, na, no, Ha, Wa).transpose(0, 1, 3, 4, 2))
        else:
            scale_col = make_scale_rows(anchors[i], na, no, float(strides[i]))
            offsets = make_xy_offsets(H, W, float(strides[i]))
            res = conv_head(x, wT, b_col, decode=True, scale_col=scale_col,
                            offsets=offsets, no=no, emit_raw=return_lead,
                            compute_dtype=compute_dtype, hw_cap=hw_cap)
            if return_lead:
                raw, dec = res
                lead.append(raw.reshape(B, na, no, H, W)
                               .transpose(0, 1, 3, 4, 2))
            else:
                dec = res
            # TODO(synk): this per-level (B,na,no,hw)->(B,na,hw,no) transpose is
            # an XLA op kept to exactly match torch's y.view(bs,-1,no) row order
            # (deferring it past the concat would reorder detections).
            z.append(dec.reshape(B, na, no, hw).transpose(0, 1, 3, 2)
                        .reshape(B, na * hw, no))

    if training:
        return lead + aux
    # TODO(synk): torch.onnx.is_in_onnx_export() branch not implemented
    # (it is an algebraically identical reformulation of the same decode).
    zc = jnp.concatenate(z, axis=1)
    return (zc, lead) if return_lead else zc


# --------------------------------------------------------------------------
# Pure-JAX reference (mirrors the PyTorch forward) for correctness checking.
# --------------------------------------------------------------------------
def ref_forward(xs, params, anchors, strides, nc, nl, na):
    no = nc + 5
    lead, aux, z = [], [], []
    for i in range(nl):
        x = xs[i]
        B, C, H, W = x.shape
        ia = params["ia"][i].reshape(1, C, 1, 1)
        b = params["b"][i].reshape(1, -1, 1, 1)
        im = params["im"][i].reshape(1, -1, 1, 1)
        y = (jnp.einsum("bchw,cd->bdhw", x + ia, params["w"][i]) + b) * im
        li = y.reshape(B, na, no, H, W).transpose(0, 1, 3, 4, 2)
        lead.append(li)

        xa = xs[i + nl]
        Ba, Ca, Ha, Wa = xa.shape
        b2 = params["b2"][i].reshape(1, -1, 1, 1)
        y2 = jnp.einsum("bchw,cd->bdhw", xa, params["w2"][i]) + b2
        aux.append(y2.reshape(Ba, na, no, Ha, Wa).transpose(0, 1, 3, 4, 2))

        sig = jax.nn.sigmoid(li)
        yv, xv = jnp.meshgrid(jnp.arange(H), jnp.arange(W), indexing="ij")
        grid = jnp.stack([xv, yv], 2).reshape(1, 1, H, W, 2).astype(jnp.float32)
        ag = anchors[i].reshape(1, na, 1, 1, 2)
        xy = (sig[..., 0:2] * 2.0 - 0.5 + grid) * strides[i]
        wh = (sig[..., 2:4] * 2.0) ** 2 * ag
        yfull = jnp.concatenate([xy, wh, sig[..., 4:]], axis=-1)
        z.append(yfull.reshape(B, -1, no))
    return jnp.concatenate(z, axis=1), lead, aux


# --------------------------------------------------------------------------
if __name__ == "__main__":
    nc, nl, na = 3, 2, 3
    no = nc + 5                       # = 8
    ch = (4, 8, 8, 16)                # lead channels (nl) then aux channels (nl)
    B = 2
    spatial = [(16, 16), (8, 8)]
    strides = (8.0, 16.0)
    anchors = jnp.array([[10, 13, 16, 30, 33, 23],
                         [30, 61, 62, 45, 59, 119]],
                        jnp.float32).reshape(nl, na, 2)

    key = jax.random.PRNGKey(0)
    keys = iter(jax.random.split(key, 32))
    cout = na * no
    params = {"ia": [], "w": [], "b": [], "im": [], "w2": [], "b2": []}
    for i in range(nl):
        cin, cin2 = ch[i], ch[nl + i]
        params["ia"].append(0.02 * jax.random.normal(next(keys), (1, cin), jnp.float32))
        params["w"].append(0.10 * jax.random.normal(next(keys), (cin, cout), jnp.float32))
        params["b"].append(0.01 * jax.random.normal(next(keys), (1, cout), jnp.float32))
        params["im"].append(1.0 + 0.02 * jax.random.normal(next(keys), (1, cout), jnp.float32))
        params["w2"].append(0.10 * jax.random.normal(next(keys), (cin2, cout), jnp.float32))
        params["b2"].append(0.01 * jax.random.normal(next(keys), (1, cout), jnp.float32))

    xs = []
    for i in range(nl):
        H, W = spatial[i]
        xs.append(jax.random.normal(next(keys), (B, ch[i], H, W), jnp.float32))
    for i in range(nl):
        H, W = spatial[i]
        xs.append(jax.random.normal(next(keys), (B, ch[nl + i], H, W), jnp.float32))

    # Pure-JAX reference.
    z_ref, lead_ref, aux_ref = ref_forward(xs, params, anchors, strides, nc, nl, na)

    # 1) Inference, f32, full module contract: (torch.cat(z, 1), x[:nl]).
    z_cat, lead = iaux_detect_forward(xs, params, anchors, strides, nc, nl, na,
                                      training=False, return_lead=True,
                                      compute_dtype=jnp.float32)
    jax.block_until_ready(z_cat)
    for t in lead:
        jax.block_until_ready(t)
    np.testing.assert_allclose(np.asarray(z_cat), np.asarray(z_ref),
                               rtol=1e-3, atol=1e-3)
    for a, b in zip(lead, lead_ref):
        np.testing.assert_allclose(np.asarray(a), np.asarray(b),
                                   rtol=1e-3, atol=1e-3)

    # 2) Inference, decode-only output (raw head write skipped entirely).
    z_only = iaux_detect_forward(xs, params, anchors, strides, nc, nl, na,
                                 training=False, return_lead=False,
                                 compute_dtype=jnp.float32)
    jax.block_until_ready(z_only)
    np.testing.assert_allclose(np.asarray(z_only), np.asarray(z_ref),
                               rtol=1e-3, atol=1e-3)

    # 3) Training path: list of 2*nl reshaped head outputs (lead + aux).
    train_out = iaux_detect_forward(xs, params, anchors, strides, nc, nl, na,
                                    training=True)
    for t in train_out:
        jax.block_until_ready(t)
    assert len(train_out) == 2 * nl
    for a, b in zip(train_out[:nl], lead_ref):
        np.testing.assert_allclose(np.asarray(a), np.asarray(b),
                                   rtol=1e-3, atol=1e-3)
    for a, b in zip(train_out[nl:], aux_ref):
        np.testing.assert_allclose(np.asarray(a), np.asarray(b),
                                   rtol=1e-3, atol=1e-3)

    # 4) bf16 feature-map pipeline (halved HBM read traffic); loose check.
    xs_bf = [x.astype(jnp.bfloat16) for x in xs]
    z_bf, _lead_bf = iaux_detect_forward(xs_bf, params, anchors, strides,
                                         nc, nl, na, training=False,
                                         return_lead=True,
                                         compute_dtype=jnp.bfloat16)
    jax.block_until_ready(z_bf)
    np.testing.assert_allclose(np.asarray(z_bf), np.asarray(z_ref),
                               rtol=3e-2, atol=3e-1)

    print("KERNEL_OK")
</pallas_src>

<mosaic_0001>
module attributes {stable_mosaic.version = 11 : i64} {
  func.func @kernel(%arg0: i32, %arg1: i32, %arg2: memref<1x4x256xf32, #tpu.memory_space<vmem>>, %arg3: memref<2x256xf32, #tpu.memory_space<vmem>>, %arg4: memref<24x4xf32, #tpu.memory_space<vmem>>, %arg5: memref<24x1xf32, #tpu.memory_space<vmem>>, %arg6: memref<24x1xf32, #tpu.memory_space<vmem>>, %arg7: memref<1x24x256xf32, #tpu.memory_space<vmem>>, %arg8: memref<1x24x256xf32, #tpu.memory_space<vmem>>) attributes {dimension_semantics = [#tpu.dimension_semantics<parallel>, #tpu.dimension_semantics<parallel>], iteration_bounds = array<i64: 2, 1>, scalar_prefetch = 0 : i64, scratch_operands = 0 : i64, tpu.core_type = #tpu.core_type<tc>, window_params = [{transform_indices = @transform_0, window_bounds = array<i64: 1, 4, 256>}, {transform_indices = @transform_1, window_bounds = array<i64: 2, 256>}, {pipeline_mode = #tpu.pipeline_mode<synchronous>, transform_indices = @transform_2, window_bounds = array<i64: 24, 4>}, {pipeline_mode = #tpu.pipeline_mode<synchronous>, transform_indices = @transform_3, window_bounds = array<i64: 24, 1>}, {pipeline_mode = #tpu.pipeline_mode<synchronous>, transform_indices = @transform_4, window_bounds = array<i64: 24, 1>}, {transform_indices = @transform_5, window_bounds = array<i64: 1, 24, 256>}, {transform_indices = @transform_6, window_bounds = array<i64: 1, 24, 256>}]} {
    %c0 = arith.constant 0 : index
    %c0_0 = arith.constant 0 : index
    %0 = vector.load %arg4[%c0, %c0_0] : memref<24x4xf32, #tpu.memory_space<vmem>>, vector<24x4xf32>
    %c0_1 = arith.constant 0 : index
    %c0_2 = arith.constant 0 : index
    %c0_3 = arith.constant 0 : index
    %1 = vector.load %arg2[%c0_1, %c0_2, %c0_3] : memref<1x4x256xf32, #tpu.memory_space<vmem>>, vector<1x4x256xf32>
    %2 = vector.shape_cast %1 : vector<1x4x256xf32> to vector<4x256xf32>
    %cst = arith.constant dense<0.000000e+00> : vector<24x256xf32>
    %3 = tpu.matmul %0, %2, %cst {dimension_numbers = #tpu.dot_dimension_numbers<[1], [0], [0], [1], [0, 0, 1, 1], [], []>} : vector<24x4xf32>, vector<4x256xf32>, vector<24x256xf32> -> vector<24x256xf32>
    %c0_4 = arith.constant 0 : index
    %c0_5 = arith.constant 0 : index
    %4 = vector.load %arg5[%c0_4, %c0_5] : memref<24x1xf32, #tpu.memory_space<vmem>>, vector<24x1xf32>
    %5 = vector.broadcast %4 : vector<24x1xf32> to vector<24x256xf32>
    %6 = arith.addf %3, %5 : vector<24x256xf32>
    %c0_6 = arith.constant 0 : index
    %c0_7 = arith.constant 0 : index
    %c0_8 = arith.constant 0 : index
    %7 = vector.load %arg7[%c0_6, %c0_7, %c0_8] : memref<1x24x256xf32, #tpu.memory_space<vmem>>, vector<1x24x256xf32>
    %8 = vector.shape_cast %7 : vector<1x24x256xf32> to vector<24x256xf32>
    %9 = vector.shape_cast %6 : vector<24x256xf32> to vector<1x24x256xf32>
    tpu.vector_store %arg7[%c0_6, %c0_7, %c0_8], %9 {strides = array<i32>} : memref<1x24x256xf32, #tpu.memory_space<vmem>>, vector<1x24x256xf32>,
    %10 = tpu.iota {dimensions = array<i32: 0>} : vector<24x1xi32>
    %c8_i32 = arith.constant 8 : i32
    %c0_i32 = arith.constant 0 : i32
    %11 = arith.cmpi eq, %c8_i32, %c0_i32 : i32
    %c1_i32 = arith.constant 1 : i32
    %12 = arith.select %11, %c1_i32, %c8_i32 : i32
    %13 = vector.broadcast %12 : i32 to vector<24x1xi32>
    %14 = arith.remsi %10, %13 : vector<24x1xi32>
    %c0_i32_9 = arith.constant 0 : i32
    %15 = vector.broadcast %c0_i32_9 : i32 to vector<24x1xi32>
    %16 = arith.cmpi ne, %14, %15 : vector<24x1xi32>
    %c0_i32_10 = arith.constant 0 : i32
    %17 = vector.broadcast %c0_i32_10 : i32 to vector<24x1xi32>
    %18 = arith.cmpi slt, %14, %17 : vector<24x1xi32>
    %c0_i32_11 = arith.constant 0 : i32
    %19 = arith.cmpi slt, %12, %c0_i32_11 : i32
    %20 = vector.broadcast %19 : i1 to vector<24x1xi1>
    %21 = vector.broadcast %20 : vector<24x1xi1> to vector<24x1xi1>
    %22 = arith.xori %18, %21 : vector<24x1xi1>
    %23 = arith.andi %22, %16 : vector<24x1xi1>
    %24 = vector.broadcast %12 : i32 to vector<24x1xi32>
    %25 = arith.addi %14, %24 : vector<24x1xi32>
    %26 = arith.select %23, %25, %14 : vector<24x1xi1>, vector<24x1xi32>
    %c0_i32_12 = arith.constant 0 : i32
    %27 = vector.broadcast %c0_i32_12 : i32 to vector<24x1xi32>
    %28 = arith.cmpi eq, %26, %27 : vector<24x1xi32>
    %c1_i32_13 = arith.constant 1 : i32
    %29 = vector.broadcast %c1_i32_13 : i32 to vector<24x1xi32>
    %30 = arith.cmpi eq, %26, %29 : vector<24x1xi32>
    %c2_i32 = arith.constant 2 : i32
    %31 = vector.broadcast %c2_i32 : i32 to vector<24x1xi32>
    %32 = arith.cmpi sge, %26, %31 : vector<24x1xi32>
    %c4_i32 = arith.constant 4 : i32
    %33 = vector.broadcast %c4_i32 : i32 to vector<24x1xi32>
    %34 = arith.cmpi slt, %26, %33 : vector<24x1xi32>
    %35 = arith.andi %32, %34 : vector<24x1xi1>
    %c0_14 = arith.constant 0 : index
    %c0_15 = arith.constant 0 : index
    %36 = vector.load %arg3[%c0_14, %c0_15] : memref<2x256xf32, #tpu.memory_space<vmem>>, vector<2x256xf32>
    %37 = arith.negf %6 : vector<24x256xf32>
    %38 = math.exp %37 : vector<24x256xf32>
    %cst_16 = arith.constant 1.000000e+00 : f32
    %39 = vector.broadcast %cst_16 : f32 to vector<24x256xf32>
    %40 = arith.addf %39, %38 : vector<24x256xf32>
    %41 = arith.divf %39, %40 : vector<24x256xf32>
    %c0_17 = arith.constant 0 : index
    %c0_18 = arith.constant 0 : index
    %42 = vector.load %arg6[%c0_17, %c0_18] : memref<24x1xf32, #tpu.memory_space<vmem>>, vector<24x1xf32>
    %43 = vector.broadcast %42 : vector<24x1xf32> to vector<24x256xf32>
    %44 = arith.mulf %41, %43 : vector<24x256xf32>
    %45 = vector.extract_strided_slice %36 {offsets = [0, 0], sizes = [1, 256], strides = [1, 1]} : vector<2x256xf32> to vector<1x256xf32>
    %46 = vector.extract_strided_slice %36 {offsets = [1, 0], sizes = [1, 256], strides = [1, 1]} : vector<2x256xf32> to vector<1x256xf32>
    %cst_19 = arith.constant 0.000000e+00 : f32
    %47 = vector.shape_cast %30 : vector<24x1xi1> to vector<24x1xi1>
    %48 = vector.broadcast %47 : vector<24x1xi1> to vector<24x256xi1>
    %49 = vector.shape_cast %46 : vector<1x256xf32> to vector<1x256xf32>
    %50 = vector.broadcast %49 : vector<1x256xf32> to vector<24x256xf32>
    %51 = vector.broadcast %cst_19 : f32 to vector<24x256xf32>
    %52 = arith.select %48, %50, %51 : vector<24x256xi1>, vector<24x256xf32>
    %53 = vector.shape_cast %28 : vector<24x1xi1> to vector<24x1xi1>
    %54 = vector.broadcast %53 : vector<24x1xi1> to vector<24x256xi1>
    %55 = vector.shape_cast %45 : vector<1x256xf32> to vector<1x256xf32>
    %56 = vector.broadcast %55 : vector<1x256xf32> to vector<24x256xf32>
    %57 = arith.select %54, %56, %52 : vector<24x256xi1>, vector<24x256xf32>
    %58 = arith.mulf %44, %44 : vector<24x256xf32>
    %59 = arith.addf %44, %57 : vector<24x256xf32>
    %60 = vector.shape_cast %35 : vector<24x1xi1> to vector<24x1xi1>
    %61 = vector.broadcast %60 : vector<24x1xi1> to vector<24x256xi1>
    %62 = arith.select %61, %58, %59 : vector<24x256xi1>, vector<24x256xf32>
    %c0_20 = arith.constant 0 : index
    %c0_21 = arith.constant 0 : index
    %c0_22 = arith.constant 0 : index
    %63 = vector.load %arg8[%c0_20, %c0_21, %c0_22] : memref<1x24x256xf32, #tpu.memory_space<vmem>>, vector<1x24x256xf32>
    %64 = vector.shape_cast %63 : vector<1x24x256xf32> to vector<24x256xf32>
    %65 = vector.shape_cast %62 : vector<24x256xf32> to vector<1x24x256xf32>
    tpu.vector_store %arg8[%c0_20, %c0_21, %c0_22], %65 {strides = array<i32>} : memref<1x24x256xf32, #tpu.memory_space<vmem>>, vector<1x24x256xf32>,
    return
  }
  func.func @transform_0(%arg0: i32, %arg1: i32) -> (i32, i32, i32) {
    %c0_i32 = arith.constant 0 : i32
    %c0_i32_0 = arith.constant 0 : i32
    return %arg0, %c0_i32, %arg1 : i32, i32, i32
  }
  func.func @transform_1(%arg0: i32, %arg1: i32) -> (i32, i32) {
    %c0_i32 = arith.constant 0 : i32
    %c0_i32_0 = arith.constant 0 : i32
    return %c0_i32, %arg1 : i32, i32
  }
  func.func @transform_2(%arg0: i32, %arg1: i32) -> (i32, i32) {
    %c0_i32 = arith.constant 0 : i32
    %c0_i32_0 = arith.constant 0 : i32
    %c0_i32_1 = arith.constant 0 : i32
    return %c0_i32, %c0_i32_0 : i32, i32
  }
  func.func @transform_3(%arg0: i32, %arg1: i32) -> (i32, i32) {
    %c0_i32 = arith.constant 0 : i32
    %c0_i32_0 = arith.constant 0 : i32
    %c0_i32_1 = arith.constant 0 : i32
    return %c0_i32, %c0_i32_0 : i32, i32
  }
  func.func @transform_4(%arg0: i32, %arg1: i32) -> (i32, i32) {
    %c0_i32 = arith.constant 0 : i32
    %c0_i32_0 = arith.constant 0 : i32
    %c0_i32_1 = arith.constant 0 : i32
    return %c0_i32, %c0_i32_0 : i32, i32
  }
  func.func @transform_5(%arg0: i32, %arg1: i32) -> (i32, i32, i32) {
    %c0_i32 = arith.constant 0 : i32
    %c0_i32_0 = arith.constant 0 : i32
    return %arg0, %c0_i32, %arg1 : i32, i32, i32
  }
  func.func @transform_6(%arg0: i32, %arg1: i32) -> (i32, i32, i32) {
    %c0_i32 = arith.constant 0 : i32
    %c0_i32_0 = arith.constant 0 : i32
    return %arg0, %c0_i32, %arg1 : i32, i32, i32
  }
}

</mosaic_0001>

<llo_original>
// kernel: tpu_custom_call.1
$region0: #{tpu_custom_call.1}
  #allocation0 [shape = 'u32[]', space=smem, size = 0x4, offset = 0x4, fixed_abs, tag = 'smem constant byte address 0x4 - core index']
  #allocation1 [shape = 'u32[144,128]{1,0:T(1,128)}', space=vmem, size = 0x12000, scoped, tag = 'internal scratch']
  %s0 = inlined_call_operand.vmem [shape: f32[2,4,256], index: 0, kind: input, shape index: {}]
  %s1 = inlined_call_operand.vmem [shape: f32[2,256], index: 1, kind: input, shape index: {}]
  %s2 = inlined_call_operand.vmem [shape: f32[24,4], index: 2, kind: input, shape index: {}]
  %s3 = inlined_call_operand.vmem [shape: f32[24,1], index: 3, kind: input, shape index: {}]
  %s4 = inlined_call_operand.vmem [shape: f32[24,1], index: 4, kind: input, shape index: {}]
  %s5 = inlined_call_operand.hbm [shape: f32[2,24,256], index: 5, kind: output, shape index: {0}]
  %s6 = inlined_call_operand.hbm [shape: f32[2,24,256], index: 6, kind: output, shape index: {1}]
  %7 = xla_tuple %s5, %s6
  %s8 = sld [smem:[#allocation0]]
  $region61: #{tpu_custom_call.1} parent=0
    _
  %s10 = ssub.s32 1, %s8
  %s11 = scalar_select 0, %s10, %s8
  $region1: #{tpu_custom_call.1} parent=0
    #allocation2 [shape = 'u8[49152]{0}', space=vmem, size = 0xc000, scoped, tag = 'output window, operand 0']
    #allocation3 [shape = 's32[2]{0}', space=sflag, size = 0x8, scoped, tag = 'scoped memory for tpu_custom_call.1']
    #allocation4 [shape = 'u8[49152]{0}', space=vmem, size = 0xc000, scoped, tag = 'output window, operand 1']
    #allocation5 [shape = 's32[2]{0}', space=sflag, size = 0x8, scoped, tag = 'scoped memory for tpu_custom_call.1']
    %12 = vsyncpa [#allocation3], 0
    %s13 = scalar_lea.sflag [#allocation3], 1
    %14 = vsyncpa %s13, 0
    %15 = vsyncpa [#allocation5], 0
    %s16 = scalar_lea.sflag [#allocation5], 1
    %17 = vsyncpa %s16, 0
    loop: start=0, step=1, limit=4
    $region2: #{tpu_custom_call.1} parent=1 // loop_pre_header
      _
    $region3: #{tpu_custom_call.1} parent=1 // loop_header
      %s19 = sphi 0, %s23
      %p20 = scmp.ge.s32.totalorder %s19, 4
      %s26 = sphi 0, %s38
      %s27 = sphi 0, %s34
      %s28 = sphi 0, %s26
      %s29 = sphi 0, %s27
      %s30 = sphi 0, %s28
      %s31 = sphi 0, %s29
      %s43 = sphi 0, %s45
      %s46 = sphi 0, %s43
      %s47 = sphi 0, %s46
      %s63 = sphi 0, %s47
      %s69 = sphi 0, %s71
      %s72 = sphi 0, %s69
      %s73 = sphi 0, %s72
      %s89 = sphi 0, %s73
      %s93 = sphi 0, %s93
      %s95 = sphi 0, %s93
      %s96 = sphi 0, %s95
      %s110 = sphi 0, %s96
      %s114 = sphi 0, %s114
      %s116 = sphi 0, %s114
      %s117 = sphi 0, %s116
      %s131 = sphi 0, %s117
      %s135 = sphi 0, %s135
      %s137 = sphi 0, %s135
      %s138 = sphi 0, %s137
      %s152 = sphi 0, %s138
      %s160 = sphi 0, %s162
      %s163 = sphi 0, %s160
      %s164 = sphi 0, %s163
      %s180 = sphi 0, %s164
      %s188 = sphi 0, %s190
      %s191 = sphi 0, %s188
      %s192 = sphi 0, %s191
      %s208 = sphi 0, %s192
    $region4: #{tpu_custom_call.1} parent=1 // loop_header_branch
      %22 = sbr.rel (%p20) target = $region8
    $region5: #{tpu_custom_call.1} parent=1 // loop_body
      %s24 = ssub.s32 %s19, 1
      %s25 = ssub.s32 %s19, 2
      %s32 = sadd.s32 1, %s27
      %p33 = scmp.ge.s32.totalorder %s32, 1
      %s34 = scalar_select %p33, 0, %s32
      %s35 = sadd.s32 1, %s26
      %s36 = scalar_select %p33, %s35, %s26
      %p37 = scmp.ge.s32.totalorder %s36, 2
      %s38 = scalar_select %p37, 0, %s36
      %s39 = ssub.s32 %s26, %s38
      %s40 = ssub.s32 %s27, %s34
      %s41 = sor.u32 %s39, %s40
      %p42 = scmp.eq.s32.totalorder %s41, 0
      %s44 = sadd.s32 %s43, 1
      %s45 = scalar_select %p42, %s43, %s44
      %p48 = pneg %p42
      %p49 = scmp.eq.s32.totalorder %s19, 1
      %p50 = por %p48, %p49
      %p51 = scmp.ne.s32.totalorder %s43, %s46
      %p52 = scmp.eq.s32.totalorder %s19, 0
      %p53 = por %p51, %p52
      %p54 = scmp.ne.s32.totalorder %s43, %s46
      %p55 = scmp.eq.s32.totalorder %s24, 1
      %p56 = por %p54, %p55
      %p57 = scmp.ne.s32.totalorder %s46, %s47
      %p58 = scmp.eq.s32.totalorder %s24, 0
      %p59 = por %p57, %p58
      %p60 = scmp.ne.s32.totalorder %s46, %s47
      %p61 = scmp.eq.s32.totalorder %s25, 1
      %p62 = por %p60, %p61
      %p64 = scmp.ne.s32.totalorder %s47, %s63
      %p65 = scmp.eq.s32.totalorder %s25, 0
      %p66 = por %p64, %p65
      %s67 = ssub.s32 %s27, %s34
      %p68 = scmp.eq.s32.totalorder %s67, 0
      %s70 = sadd.s32 %s69, 1
      %s71 = scalar_select %p68, %s69, %s70
      %p74 = pneg %p68
      %p75 = scmp.eq.s32.totalorder %s19, 1
      %p76 = por %p74, %p75
      %p77 = scmp.ne.s32.totalorder %s69, %s72
      %p78 = scmp.eq.s32.totalorder %s19, 0
      %p79 = por %p77, %p78
      %p80 = scmp.ne.s32.totalorder %s69, %s72
      %p81 = scmp.eq.s32.totalorder %s24, 1
      %p82 = por %p80, %p81
      %p83 = scmp.ne.s32.totalorder %s72, %s73
      %p84 = scmp.eq.s32.totalorder %s24, 0
      %p85 = por %p83, %p84
      %p86 = scmp.ne.s32.totalorder %s72, %s73
      %p87 = scmp.eq.s32.totalorder %s25, 1
      %p88 = por %p86, %p87
      %p90 = scmp.ne.s32.totalorder %s73, %s89
      %p91 = scmp.eq.s32.totalorder %s25, 0
      %p92 = por %p90, %p91
      %s94 = sadd.s32 %s93, 1
      %p97 = scmp.eq.s32.totalorder %s19, 1
      %p98 = scmp.ne.s32.totalorder %s93, %s95
      %p99 = scmp.eq.s32.totalorder %s19, 0
      %p100 = por %p98, %p99
      %p101 = scmp.ne.s32.totalorder %s93, %s95
      %p102 = scmp.eq.s32.totalorder %s24, 1
      %p103 = por %p101, %p102
      %p104 = scmp.ne.s32.totalorder %s95, %s96
      %p105 = scmp.eq.s32.totalorder %s24, 0
      %p106 = por %p104, %p105
      %p107 = scmp.ne.s32.totalorder %s95, %s96
      %p108 = scmp.eq.s32.totalorder %s25, 1
      %p109 = por %p107, %p108
      %p111 = scmp.ne.s32.totalorder %s96, %s110
      %p112 = scmp.eq.s32.totalorder %s25, 0
      %p113 = por %p111, %p112
      %s115 = sadd.s32 %s114, 1
      %p118 = scmp.eq.s32.totalorder %s19, 1
      %p119 = scmp.ne.s32.totalorder %s114, %s116
      %p120 = scmp.eq.s32.totalorder %s19, 0
      %p121 = por %p119, %p120
      %p122 = scmp.ne.s32.totalorder %s114, %s116
      %p123 = scmp.eq.s32.totalorder %s24, 1
      %p124 = por %p122, %p123
      %p125 = scmp.ne.s32.totalorder %s116, %s117
      %p126 = scmp.eq.s32.totalorder %s24, 0
      %p127 = por %p125, %p126
      %p128 = scmp.ne.s32.totalorder %s116, %s117
      %p129 = scmp.eq.s32.totalorder %s25, 1
      %p130 = por %p128, %p129
      %p132 = scmp.ne.s32.totalorder %s117, %s131
      %p133 = scmp.eq.s32.totalorder %s25, 0
      %p134 = por %p132, %p133
      %s136 = sadd.s32 %s135, 1
      %p139 = scmp.eq.s32.totalorder %s19, 1
      %p140 = scmp.ne.s32.totalorder %s135, %s137
      %p141 = scmp.eq.s32.totalorder %s19, 0
      %p142 = por %p140, %p141
      %p143 = scmp.ne.s32.totalorder %s135, %s137
      %p144 = scmp.eq.s32.totalorder %s24, 1
      %p145 = por %p143, %p144
      %p146 = scmp.ne.s32.totalorder %s137, %s138
      %p147 = scmp.eq.s32.totalorder %s24, 0
      %p148 = por %p146, %p147
      %p149 = scmp.ne.s32.totalorder %s137, %s138
      %p150 = scmp.eq.s32.totalorder %s25, 1
      %p151 = por %p149, %p150
      %p153 = scmp.ne.s32.totalorder %s138, %s152
      %p154 = scmp.eq.s32.totalorder %s25, 0
      %p155 = por %p153, %p154
      %s156 = ssub.s32 %s26, %s38
      %s157 = ssub.s32 %s27, %s34
      %s158 = sor.u32 %s156, %s157
      %p159 = scmp.eq.s32.totalorder %s158, 0
      %s161 = sadd.s32 %s160, 1
      %s162 = scalar_select %p159, %s160, %s161
      %p165 = pneg %p159
      %p166 = scmp.eq.s32.totalorder %s19, 1
      %p167 = por %p165, %p166
      %p168 = scmp.ne.s32.totalorder %s160, %s163
      %p169 = scmp.eq.s32.totalorder %s19, 0
      %p170 = por %p168, %p169
      %p171 = scmp.ne.s32.totalorder %s160, %s163
      %p172 = scmp.eq.s32.totalorder %s24, 1
      %p173 = por %p171, %p172
      %p174 = scmp.ne.s32.totalorder %s163, %s164
      %p175 = scmp.eq.s32.totalorder %s24, 0
      %p176 = por %p174, %p175
      %p177 = scmp.ne.s32.totalorder %s163, %s164
      %p178 = scmp.eq.s32.totalorder %s25, 1
      %p179 = por %p177, %p178
      %p181 = scmp.ne.s32.totalorder %s164, %s180
      %p182 = scmp.eq.s32.totalorder %s25, 0
      %p183 = por %p181, %p182
      %s184 = ssub.s32 %s26, %s38
      %s185 = ssub.s32 %s27, %s34
      %s186 = sor.u32 %s184, %s185
      %p187 = scmp.eq.s32.totalorder %s186, 0
      %s189 = sadd.s32 %s188, 1
      %s190 = scalar_select %p187, %s188, %s189
      %p193 = pneg %p187
      %p194 = scmp.eq.s32.totalorder %s19, 1
      %p195 = por %p193, %p194
      %p196 = scmp.ne.s32.totalorder %s188, %s191
      %p197 = scmp.eq.s32.totalorder %s19, 0
      %p198 = por %p196, %p197
      %p199 = scmp.ne.s32.totalorder %s188, %s191
      %p200 = scmp.eq.s32.totalorder %s24, 1
      %p201 = por %p199, %p200
      %p202 = scmp.ne.s32.totalorder %s191, %s192
      %p203 = scmp.eq.s32.totalorder %s24, 0
      %p204 = por %p202, %p203
      %p205 = scmp.ne.s32.totalorder %s191, %s192
      %p206 = scmp.eq.s32.totalorder %s25, 1
      %p207 = por %p205, %p206
      %p209 = scmp.ne.s32.totalorder %s192, %s208
      %p210 = scmp.eq.s32.totalorder %s25, 0
      %p211 = por %p209, %p210
      %p212 = scmp.le.s32.totalorder 1, %s19
      %p213 = scmp.lt.s32.totalorder %s19, 3
      %p214 = pnand %p212, %p213
      %p215 = pneg %p214
      // Predicated region
      $region9: #{tpu_custom_call.1} parent=5 // pred_check
        _
      $region10: #{tpu_custom_call.1} parent=5 // pred_check_branch
        %217 = sbr.rel (%p214) target = $region12
      $region11: #{tpu_custom_call.1} parent=5 // pred_region
        %s218 = ssub.s32 %s19, 1
        // Predicated region
        $region13: #{tpu_custom_call.1} parent=11 // pred_check
          %p219 = pneg %p85
        $region14: #{tpu_custom_call.1} parent=11 // pred_check_branch
          %221 = sbr.rel (%p219) target = $region16
        $region15: #{tpu_custom_call.1} parent=11 // pred_region
          %s222 = smul.u32 2, %s29
          %p223 = scmp.lt.s32.totalorder %s222, 1
          %s224 = scalar_select %p223, %s222, 1
          %s225 = smul.addr %s224, 2
          %s226 = scalar_lea.vmem %s1, %s225
          %s227 = smul.u32 2, %s29
        $region16: #{tpu_custom_call.1} parent=11 // pred_fallthru
          _
        // Predicated region
        $region17: #{tpu_custom_call.1} parent=11 // pred_check
          %p228 = pneg %p106
        $region18: #{tpu_custom_call.1} parent=11 // pred_check_branch
          %230 = sbr.rel (%p228) target = $region20
        $region19: #{tpu_custom_call.1} parent=11 // pred_region
          _
        $region20: #{tpu_custom_call.1} parent=11 // pred_fallthru
          _
        // Predicated region
        $region21: #{tpu_custom_call.1} parent=11 // pred_check
          %p231 = pneg %p127
        $region22: #{tpu_custom_call.1} parent=11 // pred_check_branch
          %233 = sbr.rel (%p231) target = $region24
        $region23: #{tpu_custom_call.1} parent=11 // pred_region
          _
        $region24: #{tpu_custom_call.1} parent=11 // pred_fallthru
          _
        // Predicated region
        $region25: #{tpu_custom_call.1} parent=11 // pred_check
          %p234 = pneg %p148
        $region26: #{tpu_custom_call.1} parent=11 // pred_check_branch
          %236 = sbr.rel (%p234) target = $region28
        $region27: #{tpu_custom_call.1} parent=11 // pred_region
          _
        $region28: #{tpu_custom_call.1} parent=11 // pred_fallthru
          _
      $region12: #{tpu_custom_call.1} parent=5 // pred_fallthru
        _
      %p237 = scmp.lt.s32.totalorder %s19, 2
      // Predicated region
      $region29: #{tpu_custom_call.1} parent=5 // pred_check
        %p238 = pneg %p237
      $region30: #{tpu_custom_call.1} parent=5 // pred_check_branch
        %240 = sbr.rel (%p238) target = $region32
      $region31: #{tpu_custom_call.1} parent=5 // pred_region
        // Predicated region
        $region33: #{tpu_custom_call.1} parent=31 // pred_check
          %p241 = pneg %p53
        $region34: #{tpu_custom_call.1} parent=31 // pred_check_branch
          %243 = sbr.rel (%p241) target = $region36
        $region35: #{tpu_custom_call.1} parent=31 // pred_region
          %s244 = smul.u32 2, %s27
          %p245 = scmp.lt.s32.totalorder %s26, 1
          %s246 = scalar_select %p245, %s26, 1
          %p247 = scmp.lt.s32.totalorder %s244, 1
          %s248 = scalar_select %p247, %s244, 1
          %s249 = smul.addr %s246, 2
          %s250 = sadd.s32 %s248, %s249
          %s251 = smul.addr %s250, 4
          %s252 = scalar_lea.vmem %s0, %s251
          %s253 = smul.u32 2, %s27
        $region36: #{tpu_custom_call.1} parent=31 // pred_fallthru
          _
      $region32: #{tpu_custom_call.1} parent=5 // pred_fallthru
        _
      %p254 = scmp.le.s32.totalorder 1, %s19
      %p255 = scmp.lt.s32.totalorder %s19, 3
      %p256 = pnand %p254, %p255
      %p257 = pneg %p256
      // Predicated region
      $region37: #{tpu_custom_call.1} parent=5 // pred_check
        _
      $region38: #{tpu_custom_call.1} parent=5 // pred_check_branch
        %259 = sbr.rel (%p256) target = $region40
      $region39: #{tpu_custom_call.1} parent=5 // pred_region
        %s260 = ssub.s32 %s19, 1
        %s261 = smul.u32 2, %s29
        %p262 = scmp.lt.s32.totalorder %s28, 1
        %s263 = scalar_select %p262, %s28, 1
        %p264 = scmp.lt.s32.totalorder %s261, 1
        %s265 = scalar_select %p264, %s261, 1
        %s266 = smul.addr %s263, 2
        %s267 = sadd.s32 %s265, %s266
        %s268 = smul.addr %s267, 4
        %s269 = scalar_lea.vmem %s0, %s268
        %p270 = pneg %p59
        %p271 = pneg %p56
        %s272 = smul.u32 2, %s29
        %p273 = scmp.lt.s32.totalorder %s272, 1
        %s274 = scalar_select %p273, %s272, 1
        %s275 = smul.addr %s274, 2
        %s276 = scalar_lea.vmem %s1, %s275
        %p277 = pneg %p85
        %p278 = pneg %p82
        %p279 = pneg %p106
        %p280 = pneg %p103
        %p281 = pneg %p127
        %p282 = pneg %p124
        %p283 = pneg %p148
        %p284 = pneg %p145
        %p285 = pneg %p176
        %p286 = pneg %p173
        %s287 = sand.u32 %s163, 1
        %s288 = scalar_lea.sflag [#allocation3], %s287
        %s289 = sand.u32 %s163, 1
        %s290 = smul.addr %s289, 48
        %s291 = scalar_lea.vmem [#allocation2], %s290
        %p292 = pneg %p204
        %p293 = pneg %p201
        %s294 = sand.u32 %s191, 1
        %s295 = scalar_lea.sflag [#allocation5], %s294
        %s296 = sand.u32 %s191, 1
        %s297 = smul.addr %s296, 48
        %s298 = scalar_lea.vmem [#allocation4], %s297
        %s299 = smul.u32 2, %s29
        %p300 = scmp.lt.s32.totalorder %s28, 1
        %s301 = scalar_select %p300, %s28, 1
        %p302 = scmp.lt.s32.totalorder %s299, 1
        %s303 = scalar_select %p302, %s299, 1
        %s304 = smul.addr %s301, 2
        %s305 = sadd.s32 %s303, %s304
        %s306 = smul.addr %s305, 4
        %s307 = scalar_lea.vmem %s0, %s306
        %s308 = smul.u32 2, %s29
        %s309 = smul.u32 2, %s29
        %p310 = scmp.lt.s32.totalorder %s309, 1
        %s311 = scalar_select %p310, %s309, 1
        %s312 = smul.addr %s311, 2
        %s313 = scalar_lea.vmem %s1, %s312
        %s314 = smul.u32 2, %s29
        %s315 = smul.u32 2, %s29
        %s316 = smul.u32 2, %s29
        %v317 = vld [vmem:[%s2] sm:$0xff]
        %v318 = vld [vmem:[%s2 + $0x8] sm:$0xff]
        %v319 = vld [vmem:[%s2 + $0x10] sm:$0xff]
        %v320 = vld [vmem:[%s307] sm:$0xff]
        %v321 = vld [vmem:[%s3] sm:$0xff]
        %v322 = vld [vmem:[%s3 + $0x8] sm:$0xff]
        %v323 = vld [vmem:[%s3 + $0x10] sm:$0xff]
        %325 = vset.pattern.permute.xlu0 0
        %326 = vperm.xlu0 %325, %v321
        %v327 = vpop.permute.xlu0 %326
        %330 = vset.pattern.permute.xlu0 0
        %331 = vperm.xlu0 %330, %v322
        %v332 = vpop.permute.xlu0 %331
        %335 = vset.pattern.permute.xlu0 0
        %336 = vperm.xlu0 %335, %v323
        %v337 = vpop.permute.xlu0 %336
        %v340 = vcombine.high %v320, %v320
        %vm341 = vcmask 31744
        %v343 = vsel %vm341, %v317, 0
        %v346 = vsel %vm341, %v318, 0
        %v349 = vsel %vm341, %v319, 0
        %vm351 = vcmask 1043456
        %v352 = vsel %vm351, %v320, 0
        %v354 = vsel %vm351, %v340, 0
        %356 = vmatprep.subr.mxu0 %v354
        %357 = vmatpush1.msra.mxu0 %v352
        %358 = vmatprep.subr.mxu0 0.0
        %359 = vmatpush1.msra.mxu0 0.0
        %360 = vmatprep.subr.mxu0 0.0
        %361 = vmatpush1.msra.mxu0 0.0
        %362 = vmatprep.subr.mxu0 0.0
        %363 = vmatpush1.msra.mxu0 0.0
        %364 = vmatprep.subr.mxu0 0.0
        %365 = vmatpush1.msra.mxu0 0.0
        %366 = vmatprep.subr.mxu0 0.0
        %367 = vmatpush1.msra.mxu0 0.0
        %368 = vmatprep.subr.mxu0 0.0
        %369 = vmatpush1.msra.mxu0 0.0
        %370 = vmatprep.subr.mxu0 0.0
        %371 = vmatpush1.msra.mxu0 0.0
        %372 = vmatprep.subr.mxu0 0.0
        %373 = vmatpush1.msra.mxu0 0.0
        %374 = vmatprep.subr.mxu0 0.0
        %375 = vmatpush1.msra.mxu0 0.0
        %376 = vmatprep.subr.mxu0 0.0
        %377 = vmatpush1.msra.mxu0 0.0
        %378 = vmatprep.subr.mxu0 0.0
        %379 = vmatpush1.msra.mxu0 0.0
        %380 = vmatprep.subr.mxu0 0.0
        %381 = vmatpush1.msra.mxu0 0.0
        %382 = vmatprep.subr.mxu0 0.0
        %383 = vmatpush1.msra.mxu0 0.0
        %384 = vmatprep.subr.mxu0 0.0
        %385 = vmatpush1.msra.mxu0 0.0
        %386 = vmatprep.subr.mxu0 0.0
        %387 = vmatpush1.msra.mxu0 0.0
        %388 = vmatprep.subr.mxu0 0.0
        %389 = vmatpush1.msra.mxu0 0.0
        %390 = vmatprep.subr.mxu0 0.0
        %391 = vmatpush1.msra.mxu0 0.0
        %392 = vmatprep.subr.mxu0 0.0
        %393 = vmatpush1.msra.mxu0 0.0
        %394 = vmatprep.subr.mxu0 0.0
        %395 = vmatpush1.msra.mxu0 0.0
        %396 = vmatprep.subr.mxu0 0.0
        %397 = vmatpush1.msra.mxu0 0.0
        %398 = vmatprep.subr.mxu0 0.0
        %399 = vmatpush1.msra.mxu0 0.0
        %400 = vmatprep.subr.mxu0 0.0
        %401 = vmatpush1.msra.mxu0 0.0
        %402 = vmatprep.subr.mxu0 0.0
        %403 = vmatpush1.msra.mxu0 0.0
        %404 = vmatprep.subr.mxu0 0.0
        %405 = vmatpush1.msra.mxu0 0.0
        %406 = vmatprep.subr.mxu0 0.0
        %407 = vmatpush1.msra.mxu0 0.0
        %408 = vmatprep.subr.mxu0 0.0
        %409 = vmatpush1.msra.mxu0 0.0
        %410 = vmatprep.subr.mxu0 0.0
        %411 = vmatpush1.msra.mxu0 0.0
        %412 = vmatprep.subr.mxu0 0.0
        %413 = vmatpush1.msra.mxu0 0.0
        %414 = vmatprep.subr.mxu0 0.0
        %415 = vmatpush1.msra.mxu0 0.0
        %416 = vmatprep.subr.mxu0 0.0
        %417 = vmatpush1.msra.mxu0 0.0
        %418 = vmatprep.subr.mxu0 0.0
        %419 = vmatpush1.msra.mxu0 0.0
        %420 = vmatprep.mubr.f32.mxu0 0.0
        %421 = vmatmul.mubr.f32.gmra.mrb[0].mxu0 %v343
        %v422 = vpop.f32.mrb[0].mxu0
        %v423 = vadd.f32 %v327, %v422
        %v424 = vpop.f32.mrb[0].mxu0
        %v425 = vadd.f32 %v327, %v424
        %426 = vmatprep.mubr.f32.mxu0 0.0
        %427 = vmatmul.mubr.f32.gmra.mrb[0].mxu0 %v346
        %v428 = vpop.f32.mrb[0].mxu0
        %v429 = vadd.f32 %v332, %v428
        %v430 = vpop.f32.mrb[0].mxu0
        %v431 = vadd.f32 %v332, %v430
        %432 = vmatprep.mubr.f32.mxu0 0.0
        %433 = vmatmul.mubr.f32.gmra.mrb[0].mxu0 %v349
        %v434 = vpop.f32.mrb[0].mxu0
        %v435 = vadd.f32 %v337, %v434
        %v436 = vpop.f32.mrb[0].mxu0
        %v437 = vadd.f32 %v337, %v436
        %438 = vdwg.mxu0
        %439 = vst [vmem:[%s291] sm:$0xff] %v423
        %440 = vst [vmem:[%s291 + $0x8] sm:$0xff] %v425
        %441 = vst [vmem:[%s291 + $0x10] sm:$0xff] %v429
        %442 = vst [vmem:[%s291 + $0x18] sm:$0xff] %v431
        %443 = vst [vmem:[%s291 + $0x20] sm:$0xff] %v435
        %444 = vst [vmem:[%s291 + $0x28] sm:$0xff] %v437
        %v445 = vlaneseq
        %v446 = vshrl.u32 %v445, 7
        %v447 = vadd.s32 %v446, 8
        %v448 = vadd.s32 %v446, 16
        %vm449 = vcmp.lt.s32.totalorder %v446, 0
        %v450 = vsub.s32 0, %v446
        %v451 = vsel %vm449, %v450, %v446
        %v452 = vshrl.u32 %v451, 3
        %v453 = vand.u32 %v451, 7
        %v454 = vsub.s32 0, %v453
        %v455 = vsel %vm449, %v454, %v453
        %vm456 = vcmp.lt.s32.totalorder %v447, 0
        %v457 = vsub.s32 0, %v447
        %v458 = vsel %vm456, %v457, %v447
        %v459 = vshrl.u32 %v458, 3
        %v460 = vand.u32 %v458, 7
        %v461 = vsub.s32 0, %v460
        %v462 = vsel %vm456, %v461, %v460
        %vm463 = vcmp.lt.s32.totalorder %v448, 0
        %v464 = vsub.s32 0, %v448
        %v465 = vsel %vm463, %v464, %v448
        %v466 = vshrl.u32 %v465, 3
        %v467 = vand.u32 %v465, 7
        %v468 = vsub.s32 0, %v467
        %v469 = vsel %vm463, %v468, %v467
        %vm470 = vcmp.ne.s32.totalorder %v455, 0
        %vm471 = vcmp.ne.s32.totalorder %v462, 0
        %vm472 = vcmp.ne.s32.totalorder %v469, 0
        %vm473 = vcmp.lt.s32.totalorder %v455, 0
        %vm474 = vcmp.lt.s32.totalorder %v462, 0
        %vm475 = vcmp.lt.s32.totalorder %v469, 0
        %vm476 = vmand %vm473, %vm470
        %vm477 = vmand %vm474, %vm471
        %vm478 = vmand %vm475, %vm472
        %v479 = vadd.s32 %v455, 8
        %v480 = vadd.s32 %v462, 8
        %v481 = vadd.s32 %v469, 8
        %v482 = vsel %vm476, %v479, %v455
        %v483 = vsel %vm477, %v480, %v462
        %v484 = vsel %vm478, %v481, %v469
        %vm485 = vcmp.eq.s32.totalorder %v482, 0
        %vm486 = vcmp.eq.s32.totalorder %v483, 0
        %vm487 = vcmp.eq.s32.totalorder %v484, 0
        %vm488 = vcmp.eq.s32.totalorder %v482, 1
        %vm489 = vcmp.eq.s32.totalorder %v483, 1
        %vm490 = vcmp.eq.s32.totalorder %v484, 1
        %vm491 = vcmp.ge.s32.totalorder %v482, 2
        %vm492 = vcmp.ge.s32.totalorder %v483, 2
        %vm493 = vcmp.ge.s32.totalorder %v484, 2
        %vm494 = vcmp.lt.s32.totalorder %v482, 4
        %vm495 = vcmp.lt.s32.totalorder %v483, 4
        %vm496 = vcmp.lt.s32.totalorder %v484, 4
        %vm497 = vmand %vm491, %vm494
        %vm498 = vmand %vm492, %vm495
        %vm499 = vmand %vm493, %vm496
        %v500 = vld [vmem:[%s313] sm:$0xf]
        %v501 = vxor.u32 %v423, 2147483648
        %v502 = vxor.u32 %v425, 2147483648
        %v503 = vxor.u32 %v429, 2147483648
        %v504 = vxor.u32 %v431, 2147483648
        %v505 = vxor.u32 %v435, 2147483648
        %v506 = vxor.u32 %v437, 2147483648
        %v507 = vmul.f32 %v501, 1.442695
        %v508 = vpow.pop %v507
        %v509 = vmul.f32 %v502, 1.442695
        %v510 = vpow.pop %v509
        %v511 = vmul.f32 %v503, 1.442695
        %v512 = vpow.pop %v511
        %v513 = vmul.f32 %v504, 1.442695
        %v514 = vpow.pop %v513
        %v515 = vmul.f32 %v505, 1.442695
        %v516 = vpow.pop %v515
        %v517 = vmul.f32 %v506, 1.442695
        %v518 = vpow.pop %v517
        %v519 = vadd.f32 %v508, 1.0
        %v520 = vadd.f32 %v510, 1.0
        %v521 = vadd.f32 %v512, 1.0
        %v522 = vadd.f32 %v514, 1.0
        %v523 = vadd.f32 %v516, 1.0
        %v524 = vadd.f32 %v518, 1.0
        %v525 = vrcp.pop %v519
        %v526 = vmul.f32 1.0, %v525
        %v527 = vrcp.pop %v520
        %v528 = vmul.f32 1.0, %v527
        %v529 = vrcp.pop %v521
        %v530 = vmul.f32 1.0, %v529
        %v531 = vrcp.pop %v522
        %v532 = vmul.f32 1.0, %v531
        %v533 = vrcp.pop %v523
        %v534 = vmul.f32 1.0, %v533
        %v535 = vrcp.pop %v524
        %v536 = vmul.f32 1.0, %v535
        %v537 = vld [vmem:[%s4] sm:$0xff]
        %v538 = vld [vmem:[%s4 + $0x8] sm:$0xff]
        %v539 = vld [vmem:[%s4 + $0x10] sm:$0xff]
        %541 = vset.pattern.permute.xlu0 0
        %542 = vperm.xlu0 %541, %v537
        %v543 = vpop.permute.xlu0 %542
        %546 = vset.pattern.permute.xlu0 0
        %547 = vperm.xlu0 %546, %v538
        %v548 = vpop.permute.xlu0 %547
        %551 = vset.pattern.permute.xlu0 0
        %552 = vperm.xlu0 %551, %v539
        %v553 = vpop.permute.xlu0 %552
        %v555 = vmul.f32 %v526, %v543
        %v556 = vmul.f32 %v528, %v543
        %v557 = vmul.f32 %v530, %v548
        %v558 = vmul.f32 %v532, %v548
        %v559 = vmul.f32 %v534, %v553
        %v560 = vmul.f32 %v536, %v553
        %v561 = vsel %vm488, 1, 0
        %v562 = vsel %vm489, 1, 0
        %v563 = vsel %vm490, 1, 0
        %vm564 = vcmp.eq.s32.totalorder %v561, 1
        %vm565 = vcmp.eq.s32.totalorder %v562, 1
        %vm566 = vcmp.eq.s32.totalorder %v563, 1
        %v568 = vlaneseq
        %v569 = vshrl.u32 %v568, 7
        %v570 = vsub.s32 1, %v569
        %v571 = vrot.slane %v500, %v570
        %v572 = vlaneseq
        %v573 = vshrl.u32 %v572, 7
        %v574 = vsub.s32 3, %v573
        %v575 = vrot.slane %v500, %v574
        %v578 = vlaneseq
        %v579 = vshrl.u32 %v578, 7
        %v580 = vsub.s32 1, %v579
        %v581 = vrot.slane %v571, %v580
        %v582 = vlaneseq
        %v583 = vshrl.u32 %v582, 7
        %v584 = vsub.s32 1, %v583
        %v585 = vrot.slane %v575, %v584
        %v586 = vsel %vm564, %v581, 0.0
        %v587 = vsel %vm564, %v585, 0.0
        %v588 = vsel %vm565, %v581, 0.0
        %v589 = vsel %vm565, %v585, 0.0
        %v590 = vsel %vm566, %v581, 0.0
        %v591 = vsel %vm566, %v585, 0.0
        %v592 = vsel %vm485, 1, 0
        %v593 = vsel %vm486, 1, 0
        %v594 = vsel %vm487, 1, 0
        %vm595 = vcmp.eq.s32.totalorder %v592, 1
        %vm596 = vcmp.eq.s32.totalorder %v593, 1
        %vm597 = vcmp.eq.s32.totalorder %v594, 1
        %v598 = vlaneseq
        %v599 = vshrl.u32 %v598, 7
        %v600 = vsub.s32 0, %v599
        %v601 = vrot.slane %v500, %v600
        %v602 = vlaneseq
        %v603 = vshrl.u32 %v602, 7
        %v604 = vsub.s32 2, %v603
        %v605 = vrot.slane %v500, %v604
        %v608 = vlaneseq
        %v609 = vshrl.u32 %v608, 7
        %v610 = vsub.s32 0, %v609
        %v611 = vrot.slane %v601, %v610
        %v612 = vlaneseq
        %v613 = vshrl.u32 %v612, 7
        %v614 = vsub.s32 0, %v613
        %v615 = vrot.slane %v605, %v614
        %v616 = vsel %vm595, %v611, %v586
        %v617 = vsel %vm595, %v615, %v587
        %v618 = vsel %vm596, %v611, %v588
        %v619 = vsel %vm596, %v615, %v589
        %v620 = vsel %vm597, %v611, %v590
        %v621 = vsel %vm597, %v615, %v591
        %v622 = vmul.f32 %v555, %v555
        %v623 = vmul.f32 %v556, %v556
        %v624 = vmul.f32 %v557, %v557
        %v625 = vmul.f32 %v558, %v558
        %v626 = vmul.f32 %v559, %v559
        %v627 = vmul.f32 %v560, %v560
        %v628 = vadd.f32 %v555, %v616
        %v629 = vadd.f32 %v556, %v617
        %v630 = vadd.f32 %v557, %v618
        %v631 = vadd.f32 %v558, %v619
        %v632 = vadd.f32 %v559, %v620
        %v633 = vadd.f32 %v560, %v621
        %v634 = vsel %vm497, 1, 0
        %v635 = vsel %vm498, 1, 0
        %v636 = vsel %vm499, 1, 0
        %vm637 = vcmp.eq.s32.totalorder %v634, 1
        %vm638 = vcmp.eq.s32.totalorder %v635, 1
        %vm639 = vcmp.eq.s32.totalorder %v636, 1
        %v640 = vsel %vm637, %v622, %v628
        %v641 = vsel %vm637, %v623, %v629
        %v642 = vsel %vm638, %v624, %v630
        %v643 = vsel %vm638, %v625, %v631
        %v644 = vsel %vm639, %v626, %v632
        %v645 = vsel %vm639, %v627, %v633
        %646 = vst [vmem:[%s298] sm:$0xff] %v640
        %647 = vst [vmem:[%s298 + $0x8] sm:$0xff] %v641
        %648 = vst [vmem:[%s298 + $0x10] sm:$0xff] %v642
        %649 = vst [vmem:[%s298 + $0x18] sm:$0xff] %v643
        %650 = vst [vmem:[%s298 + $0x20] sm:$0xff] %v644
        %651 = vst [vmem:[%s298 + $0x28] sm:$0xff] %v645
        %s652 = sand.u32 %s163, 1
        %s653 = scalar_lea.sflag [#allocation3], %s652
        %s654 = sand.u32 %s163, 1
        %s655 = smul.addr %s654, 48
        %s656 = scalar_lea.vmem [#allocation2], %s655
        %s657 = sand.u32 %s191, 1
        %s658 = scalar_lea.sflag [#allocation5], %s657
        %s659 = sand.u32 %s191, 1
        %s660 = smul.addr %s659, 48
        %s661 = scalar_lea.vmem [#allocation4], %s660
        // Predicated region
        $region41: #{tpu_custom_call.1} parent=39 // pred_check
          %p662 = pneg %p173
        $region42: #{tpu_custom_call.1} parent=39 // pred_check_branch
          %664 = sbr.rel (%p662) target = $region44
        $region43: #{tpu_custom_call.1} parent=39 // pred_region
          %s665 = smul.u32 2, %s29
          %s667 = ssub.s32 768, 768
          %668 = vsyncadd %s653, %s667
          %s669 = smul.addr %s28, 6
          %s670 = sadd.s32 %s665, %s669
          %s671 = smul.addr %s670, 128
          %s672 = scalar_lea.hbm %s5, %s671
          %s673 = sshll.u32 %s656, 4
          %s674 = int_to_ptr.vmem [resolvable:$true] %s673
          %679 = dma.vmem_to_hbm [thread:$0]  %s674, 768, %s672, %s653, 256, 256, 16
        $region44: #{tpu_custom_call.1} parent=39 // pred_fallthru
          _
        // Predicated region
        $region45: #{tpu_custom_call.1} parent=39 // pred_check
          %p680 = pneg %p201
        $region46: #{tpu_custom_call.1} parent=39 // pred_check_branch
          %682 = sbr.rel (%p680) target = $region48
        $region47: #{tpu_custom_call.1} parent=39 // pred_region
          %s683 = smul.u32 2, %s29
          %s685 = ssub.s32 768, 768
          %686 = vsyncadd %s658, %s685
          %s687 = smul.addr %s28, 6
          %s688 = sadd.s32 %s683, %s687
          %s689 = smul.addr %s688, 128
          %s690 = scalar_lea.hbm %s6, %s689
          %s691 = sshll.u32 %s661, 4
          %s692 = int_to_ptr.vmem [resolvable:$true] %s691
          %697 = dma.vmem_to_hbm [thread:$0]  %s692, 768, %s690, %s658, 256, 256, 16
        $region48: #{tpu_custom_call.1} parent=39 // pred_fallthru
          _
      $region40: #{tpu_custom_call.1} parent=5 // pred_fallthru
        _
      %p698 = scmp.le.s32.totalorder 2, %s19
      // Predicated region
      $region49: #{tpu_custom_call.1} parent=5 // pred_check
        %p699 = pneg %p698
      $region50: #{tpu_custom_call.1} parent=5 // pred_check_branch
        %701 = sbr.rel (%p699) target = $region52
      $region51: #{tpu_custom_call.1} parent=5 // pred_region
        %s702 = ssub.s32 %s19, 2
        // Predicated region
        $region53: #{tpu_custom_call.1} parent=51 // pred_check
          %p703 = pneg %p179
        $region54: #{tpu_custom_call.1} parent=51 // pred_check_branch
          %705 = sbr.rel (%p703) target = $region56
        $region55: #{tpu_custom_call.1} parent=51 // pred_region
          %s706 = sand.u32 %s164, 1
          %s707 = scalar_lea.sflag [#allocation3], %s706
          %s708 = sand.u32 %s164, 1
          %s709 = smul.addr %s708, 48
          %s710 = scalar_lea.vmem [#allocation2], %s709
          %711 = dma.done %s707, 768
        $region56: #{tpu_custom_call.1} parent=51 // pred_fallthru
          _
        // Predicated region
        $region57: #{tpu_custom_call.1} parent=51 // pred_check
          %p712 = pneg %p207
        $region58: #{tpu_custom_call.1} parent=51 // pred_check_branch
          %714 = sbr.rel (%p712) target = $region60
        $region59: #{tpu_custom_call.1} parent=51 // pred_region
          %s715 = sand.u32 %s192, 1
          %s716 = scalar_lea.sflag [#allocation5], %s715
          %s717 = sand.u32 %s192, 1
          %s718 = smul.addr %s717, 48
          %s719 = scalar_lea.vmem [#allocation4], %s718
          %720 = dma.done %s716, 768
        $region60: #{tpu_custom_call.1} parent=51 // pred_fallthru
          _
      $region52: #{tpu_custom_call.1} parent=5 // pred_fallthru
        _
    $region6: #{tpu_custom_call.1} parent=1 // loop_footer
      %s23 = sadd.s32 1, %s19
    $region7: #{tpu_custom_call.1} parent=1 // loop_footer_branch
      %18 = sbr.rel target = $region3
    $region8: #{tpu_custom_call.1} parent=1 // loop_exit
      _
    %721 = vsyncpa [#allocation3], 1
    %s722 = scalar_lea.sflag [#allocation3], 1
    %723 = vsyncpa %s722, 1
    %724 = vsyncpa [#allocation5], 1
    %s725 = scalar_lea.sflag [#allocation5], 1
    %726 = vsyncpa %s725, 1

</llo_original>
